<compile_context>
chip_gen: v6e
topology: v6e:2x2x1
jax: 0.10.0
libtpu: 0.0.40
codegen_flags: <defaults>
</compile_context>

<pallas_src>
import jax
import jax.numpy as jnp
from jax.experimental import pallas as pl
from jax.experimental.pallas import tpu as pltpu

_GRAY_COEFFS = (65.738 / 256.0, 129.057 / 256.0, 25.064 / 256.0)
_TARGET_BLOCK_BYTES = 2 * 1024 * 1024  # ~2 MiB of input pixels per grid step


def _pick_tiles(N, C, H, W, tile_h, block_n):
    """Pick (batch-block NB, H-tile TH) so each grid step moves a decent, VMEM-friendly
    chunk on v5e (16 MiB scoped default) through v7x (64 MiB physical VMEM)."""
    row_bytes = 4 * C * W
    if tile_h is None:
        if H <= 8 or H * row_bytes <= _TARGET_BLOCK_BYTES:
            tile_h = H
        else:
            tile_h = max(8, min(H, (_TARGET_BLOCK_BYTES // row_bytes) // 8 * 8))
            # Prefer a multiple-of-8 divisor of H (avoids a ragged last tile).
            for cand in range(tile_h, max(7, tile_h // 2), -8):
                if H % cand == 0:
                    tile_h = cand
                    break
    assert tile_h == H or tile_h % 8 == 0, "tile_h must equal H or be a multiple of 8"
    if block_n is None:
        block_n = 1
        if tile_h == H:  # small images: batch several per grid step
            img_bytes = H * row_bytes
            while (block_n < N and N % (2 * block_n) == 0
                   and 2 * block_n * img_bytes <= _TARGET_BLOCK_BYTES):
                block_n *= 2
    return block_n, tile_h


def _make_kernel(C, NB, TH, W, H, ragged_h):
    c0, c1, c2 = _GRAY_COEFFS

    def kernel(x_ref, halo_ref, o_ref, gpad_ref):
        # x_ref:    (NB, C, TH, W)   unpadded H-tile of NB images
        # halo_ref: (NB, 2*C, W)     row just above (first C chans) / below (last C)
        # o_ref:    (NB, TH, W)
        # gpad_ref: (NB, TH+2, W+2)  VMEM scratch: zero-padded gray tile
        x = x_ref[...]
        h = halo_ref[...]
        if C == 3:
            g = c0 * x[:, 0] + c1 * x[:, 1] + c2 * x[:, 2]                 # (NB, TH, W)
            g_top = c0 * h[:, 0:1] + c1 * h[:, 1:2] + c2 * h[:, 2:3]       # (NB, 1, W)
            g_bot = c0 * h[:, 3:4] + c1 * h[:, 4:5] + c2 * h[:, 5:6]       # (NB, 1, W)
        else:
            g = x[:, 0]
            g_top = h[:, 0:1]
            g_bot = h[:, 1:2]

        if ragged_h:
            # Last H-tile may stick out past H: zero the out-of-image rows so they do
            # not leak into the last valid output row via the +1 row shift.
            t = pl.program_id(1)
            row = jax.lax.broadcasted_iota(jnp.int32, (NB, TH, W), 1) + t * TH
            g = jnp.where(row < H, g, 0.0)

        # Assemble the zero-padded gray tile in VMEM (replaces the old full-array
        # jnp.pad in HBM).
        gpad_ref[...] = jnp.zeros_like(gpad_ref)
        gpad_ref[:, 1:TH + 1, 1:W + 1] = g
        gpad_ref[:, 0:1, 1:W + 1] = g_top
        gpad_ref[:, TH + 1:TH + 2, 1:W + 1] = g_bot

        # Shifted-window reads of the scratch ref implement the two 3x3 stencils.
        x_v = gpad_ref[:, 2:TH + 2, 1:W + 1] - gpad_ref[:, 0:TH, 1:W + 1]
        x_h = gpad_ref[:, 1:TH + 1, 2:W + 2] - gpad_ref[:, 1:TH + 1, 0:W]
        o_ref[...] = jnp.sqrt(x_v * x_v + x_h * x_h + 1e-6)

    return kernel


def grad_layer(x, *, tile_h=None, block_n=None):
    """x: (N, C, H, W) with C in {1, 3}. Returns (N, 1, H, W) float32."""
    N, C, H, W = x.shape
    assert C in (1, 3), "GradLayer supports 1- or 3-channel inputs"
    x = x.astype(jnp.float32)

    NB, TH = _pick_tiles(N, C, H, W, tile_h, block_n)
    nH = pl.cdiv(H, TH)
    nN = pl.cdiv(N, NB)

    # Tiny side input carrying the one-row halos of every H-tile (2*nH rows per image,
    # so total HBM traffic stays ~1x read of x + 1/C x write of the output).
    starts = jnp.arange(nH, dtype=jnp.int32) * TH
    top_idx = jnp.clip(starts - 1, 0, H - 1)
    bot_idx = jnp.clip(starts + TH, 0, H - 1)
    top_ok = (starts >= 1)[None, None, :, None]
    bot_ok = (starts + TH <= H - 1)[None, None, :, None]
    top = jnp.where(top_ok, jnp.take(x, top_idx, axis=2), 0.0)          # (N, C, nH, W)
    bot = jnp.where(bot_ok, jnp.take(x, bot_idx, axis=2), 0.0)          # (N, C, nH, W)
    halo = jnp.transpose(jnp.concatenate([top, bot], axis=1), (0, 2, 1, 3))  # (N,nH,2C,W)

    kernel = _make_kernel(C, NB, TH, W, H, ragged_h=(H % TH != 0))

    blk_bytes = 4 * NB * (C * TH * W + 2 * C * W + TH * W)      # in + halo + out block
    scr_bytes = 4 * NB * (TH + 2) * (W + 2)
    vmem_limit = int(min(48 * 2 ** 20,
                         max(16 * 2 ** 20, 2 * (2 * blk_bytes + scr_bytes))))

    hw = H * W
    cost = pl.CostEstimate(
        flops=int(N * hw * (2 * C + 7)),
        transcendentals=int(N * hw),
        bytes_accessed=int(4 * N * (C * hw + hw + 2 * C * nH * W)),
    )

    return pl.pallas_call(
        kernel,
        out_shape=jax.ShapeDtypeStruct((N, 1, H, W), jnp.float32),
        grid_spec=pltpu.PrefetchScalarGridSpec(
            num_scalar_prefetch=0,
            grid=(nN, nH),
            in_specs=[
                pl.BlockSpec((NB, C, TH, W), lambda n, t: (n, 0, t, 0)),
                pl.BlockSpec((NB, None, 2 * C, W), lambda n, t: (n, t, 0, 0)),
            ],
            out_specs=pl.BlockSpec((NB, None, TH, W), lambda n, t: (n, 0, t, 0)),
            scratch_shapes=[pltpu.VMEM((NB, TH + 2, W + 2), jnp.float32)],
        ),
        compiler_params=pltpu.CompilerParams(
            dimension_semantics=("parallel", "parallel"),
            vmem_limit_bytes=vmem_limit,
        ),
        cost_estimate=cost,
    )(x, halo)


def _reference(x):
    """Pure-JAX reference mirroring the PyTorch forward exactly."""
    x = x.astype(jnp.float32)
    if x.shape[1] == 3:
        coeffs = jnp.array(_GRAY_COEFFS, jnp.float32).reshape(1, 3, 1, 1)
        x = jnp.sum(x * coeffs, axis=1, keepdims=True)
    g = x[:, 0]
    gp = jnp.pad(g, ((0, 0), (1, 1), (1, 1)))
    x_v = gp[:, 2:, 1:-1] - gp[:, :-2, 1:-1]
    x_h = gp[:, 1:-1, 2:] - gp[:, 1:-1, :-2]
    return jnp.sqrt(x_v * x_v + x_h * x_h + 1e-6)[:, None]


if __name__ == "__main__":
    k0, k1, k2 = jax.random.split(jax.random.PRNGKey(0), 3)

    # 1) RGB, small image: whole image per H-tile, 2 images batched per grid step.
    x1 = jax.random.uniform(k0, (2, 3, 16, 16), dtype=jnp.float32)
    o1 = jax.block_until_ready(grad_layer(x1))
    r1 = _reference(x1)
    assert o1.shape == (2, 1, 16, 16), o1.shape
    assert jnp.allclose(o1, r1, atol=1e-5, rtol=1e-5), float(jnp.max(jnp.abs(o1 - r1)))

    # 2) RGB, taller image with an explicit H-tile: exercises halo rows + (n, t) grid.
    x2 = jax.random.uniform(k1, (2, 3, 32, 16), dtype=jnp.float32)
    o2 = jax.block_until_ready(grad_layer(x2, tile_h=8, block_n=1))
    r2 = _reference(x2)
    assert jnp.allclose(o2, r2, atol=1e-5, rtol=1e-5), float(jnp.max(jnp.abs(o2 - r2)))

    # 3) Single-channel path (no gray conversion).
    x3 = jax.random.uniform(k2, (2, 1, 16, 16), dtype=jnp.float32)
    o3 = jax.block_until_ready(grad_layer(x3))
    r3 = _reference(x3)
    assert jnp.allclose(o3, r3, atol=1e-5, rtol=1e-5), float(jnp.max(jnp.abs(o3 - r3)))

    print("KERNEL_OK")
</pallas_src>

<mosaic_0001>
module attributes {stable_mosaic.version = 11 : i64} {
  func.func @kernel(%arg0: i32, %arg1: i32, %arg2: memref<2x3x16x16xf32, #tpu.memory_space<vmem>>, %arg3: memref<2x1x6x16xf32, #tpu.memory_space<vmem>>, %arg4: memref<2x1x16x16xf32, #tpu.memory_space<vmem>>, %arg5: memref<2x18x18xf32, #tpu.memory_space<vmem>>) attributes {dimension_semantics = [#tpu.dimension_semantics<parallel>, #tpu.dimension_semantics<parallel>], iteration_bounds = array<i64: 1, 1>, scalar_prefetch = 0 : i64, scratch_operands = 1 : i64, tpu.core_type = #tpu.core_type<tc>, window_params = [{transform_indices = @transform_0, window_bounds = array<i64: 2, 3, 16, 16>}, {transform_indices = @transform_1, window_bounds = array<i64: 2, 1, 6, 16>}, {transform_indices = @transform_2, window_bounds = array<i64: 2, 1, 16, 16>}]} {
    %c0 = arith.constant 0 : index
    %c0_0 = arith.constant 0 : index
    %c0_1 = arith.constant 0 : index
    %c0_2 = arith.constant 0 : index
    %0 = vector.load %arg2[%c0, %c0_0, %c0_1, %c0_2] : memref<2x3x16x16xf32, #tpu.memory_space<vmem>>, vector<2x3x16x16xf32>
    %c0_3 = arith.constant 0 : index
    %c0_4 = arith.constant 0 : index
    %c0_5 = arith.constant 0 : index
    %c0_6 = arith.constant 0 : index
    %1 = vector.load %arg3[%c0_3, %c0_4, %c0_5, %c0_6] : memref<2x1x6x16xf32, #tpu.memory_space<vmem>>, vector<2x1x6x16xf32>
    %2 = vector.shape_cast %1 : vector<2x1x6x16xf32> to vector<2x6x16xf32>
    %3 = vector.extract_strided_slice %0 {offsets = [0, 0, 0, 0], sizes = [2, 1, 16, 16], strides = [1, 1, 1, 1]} : vector<2x3x16x16xf32> to vector<2x1x16x16xf32>
    %4 = vector.shape_cast %3 : vector<2x1x16x16xf32> to vector<2x16x16xf32>
    %cst = arith.constant 0.256789058 : f32
    %5 = vector.broadcast %cst : f32 to vector<2x16x16xf32>
    %6 = arith.mulf %5, %4 : vector<2x16x16xf32>
    %7 = vector.extract_strided_slice %0 {offsets = [0, 1, 0, 0], sizes = [2, 1, 16, 16], strides = [1, 1, 1, 1]} : vector<2x3x16x16xf32> to vector<2x1x16x16xf32>
    %8 = vector.shape_cast %7 : vector<2x1x16x16xf32> to vector<2x16x16xf32>
    %cst_7 = arith.constant 0.504128933 : f32
    %9 = vector.broadcast %cst_7 : f32 to vector<2x16x16xf32>
    %10 = arith.mulf %9, %8 : vector<2x16x16xf32>
    %11 = arith.addf %6, %10 : vector<2x16x16xf32>
    %12 = vector.extract_strided_slice %0 {offsets = [0, 2, 0, 0], sizes = [2, 1, 16, 16], strides = [1, 1, 1, 1]} : vector<2x3x16x16xf32> to vector<2x1x16x16xf32>
    %13 = vector.shape_cast %12 : vector<2x1x16x16xf32> to vector<2x16x16xf32>
    %cst_8 = arith.constant 0.0979062467 : f32
    %14 = vector.broadcast %cst_8 : f32 to vector<2x16x16xf32>
    %15 = arith.mulf %14, %13 : vector<2x16x16xf32>
    %16 = arith.addf %11, %15 : vector<2x16x16xf32>
    %17 = vector.extract_strided_slice %2 {offsets = [0, 0, 0], sizes = [2, 1, 16], strides = [1, 1, 1]} : vector<2x6x16xf32> to vector<2x1x16xf32>
    %cst_9 = arith.constant 0.256789058 : f32
    %18 = vector.broadcast %cst_9 : f32 to vector<2x1x16xf32>
    %19 = arith.mulf %18, %17 : vector<2x1x16xf32>
    %20 = vector.extract_strided_slice %2 {offsets = [0, 1, 0], sizes = [2, 1, 16], strides = [1, 1, 1]} : vector<2x6x16xf32> to vector<2x1x16xf32>
    %cst_10 = arith.constant 0.504128933 : f32
    %21 = vector.broadcast %cst_10 : f32 to vector<2x1x16xf32>
    %22 = arith.mulf %21, %20 : vector<2x1x16xf32>
    %23 = arith.addf %19, %22 : vector<2x1x16xf32>
    %24 = vector.extract_strided_slice %2 {offsets = [0, 2, 0], sizes = [2, 1, 16], strides = [1, 1, 1]} : vector<2x6x16xf32> to vector<2x1x16xf32>
    %cst_11 = arith.constant 0.0979062467 : f32
    %25 = vector.broadcast %cst_11 : f32 to vector<2x1x16xf32>
    %26 = arith.mulf %25, %24 : vector<2x1x16xf32>
    %27 = arith.addf %23, %26 : vector<2x1x16xf32>
    %28 = vector.extract_strided_slice %2 {offsets = [0, 3, 0], sizes = [2, 1, 16], strides = [1, 1, 1]} : vector<2x6x16xf32> to vector<2x1x16xf32>
    %cst_12 = arith.constant 0.256789058 : f32
    %29 = vector.broadcast %cst_12 : f32 to vector<2x1x16xf32>
    %30 = arith.mulf %29, %28 : vector<2x1x16xf32>
    %31 = vector.extract_strided_slice %2 {offsets = [0, 4, 0], sizes = [2, 1, 16], strides = [1, 1, 1]} : vector<2x6x16xf32> to vector<2x1x16xf32>
    %cst_13 = arith.constant 0.504128933 : f32
    %32 = vector.broadcast %cst_13 : f32 to vector<2x1x16xf32>
    %33 = arith.mulf %32, %31 : vector<2x1x16xf32>
    %34 = arith.addf %30, %33 : vector<2x1x16xf32>
    %35 = vector.extract_strided_slice %2 {offsets = [0, 5, 0], sizes = [2, 1, 16], strides = [1, 1, 1]} : vector<2x6x16xf32> to vector<2x1x16xf32>
    %cst_14 = arith.constant 0.0979062467 : f32
    %36 = vector.broadcast %cst_14 : f32 to vector<2x1x16xf32>
    %37 = arith.mulf %36, %35 : vector<2x1x16xf32>
    %38 = arith.addf %34, %37 : vector<2x1x16xf32>
    %cst_15 = arith.constant 0.000000e+00 : f32
    %39 = vector.broadcast %cst_15 : f32 to vector<2x18x18xf32>
    %c0_16 = arith.constant 0 : index
    %c0_17 = arith.constant 0 : index
    %c0_18 = arith.constant 0 : index
    %40 = vector.load %arg5[%c0_16, %c0_17, %c0_18] : memref<2x18x18xf32, #tpu.memory_space<vmem>>, vector<2x18x18xf32>
    tpu.vector_store %arg5[%c0_16, %c0_17, %c0_18], %39 {strides = array<i32>} : memref<2x18x18xf32, #tpu.memory_space<vmem>>, vector<2x18x18xf32>,
    %c0_19 = arith.constant 0 : index
    %c1 = arith.constant 1 : index
    %c1_20 = arith.constant 1 : index
    %41 = vector.load %arg5[%c0_19, %c1, %c1_20] : memref<2x18x18xf32, #tpu.memory_space<vmem>>, vector<2x16x16xf32>
    tpu.vector_store %arg5[%c0_19, %c1, %c1_20], %16 {strides = array<i32>} : memref<2x18x18xf32, #tpu.memory_space<vmem>>, vector<2x16x16xf32>,
    %c0_21 = arith.constant 0 : index
    %c0_22 = arith.constant 0 : index
    %c1_23 = arith.constant 1 : index
    %42 = vector.load %arg5[%c0_21, %c0_22, %c1_23] : memref<2x18x18xf32, #tpu.memory_space<vmem>>, vector<2x1x16xf32>
    tpu.vector_store %arg5[%c0_21, %c0_22, %c1_23], %27 {strides = array<i32>} : memref<2x18x18xf32, #tpu.memory_space<vmem>>, vector<2x1x16xf32>,
    %c0_24 = arith.constant 0 : index
    %c17 = arith.constant 17 : index
    %c1_25 = arith.constant 1 : index
    %43 = vector.load %arg5[%c0_24, %c17, %c1_25] : memref<2x18x18xf32, #tpu.memory_space<vmem>>, vector<2x1x16xf32>
    tpu.vector_store %arg5[%c0_24, %c17, %c1_25], %38 {strides = array<i32>} : memref<2x18x18xf32, #tpu.memory_space<vmem>>, vector<2x1x16xf32>,
    %c0_26 = arith.constant 0 : index
    %c2 = arith.constant 2 : index
    %c1_27 = arith.constant 1 : index
    %44 = vector.load %arg5[%c0_26, %c2, %c1_27] : memref<2x18x18xf32, #tpu.memory_space<vmem>>, vector<2x16x16xf32>
    %c0_28 = arith.constant 0 : index
    %c0_29 = arith.constant 0 : index
    %c1_30 = arith.constant 1 : index
    %45 = vector.load %arg5[%c0_28, %c0_29, %c1_30] : memref<2x18x18xf32, #tpu.memory_space<vmem>>, vector<2x16x16xf32>
    %46 = arith.subf %44, %45 : vector<2x16x16xf32>
    %c0_31 = arith.constant 0 : index
    %c1_32 = arith.constant 1 : index
    %c2_33 = arith.constant 2 : index
    %47 = vector.load %arg5[%c0_31, %c1_32, %c2_33] : memref<2x18x18xf32, #tpu.memory_space<vmem>>, vector<2x16x16xf32>
    %c0_34 = arith.constant 0 : index
    %c1_35 = arith.constant 1 : index
    %c0_36 = arith.constant 0 : index
    %48 = vector.load %arg5[%c0_34, %c1_35, %c0_36] : memref<2x18x18xf32, #tpu.memory_space<vmem>>, vector<2x16x16xf32>
    %49 = arith.subf %47, %48 : vector<2x16x16xf32>
    %50 = arith.mulf %46, %46 : vector<2x16x16xf32>
    %51 = arith.mulf %49, %49 : vector<2x16x16xf32>
    %52 = arith.addf %50, %51 : vector<2x16x16xf32>
    %cst_37 = arith.constant 9.99999997E-7 : f32
    %53 = vector.broadcast %cst_37 : f32 to vector<2x16x16xf32>
    %54 = arith.addf %52, %53 : vector<2x16x16xf32>
    %55 = math.sqrt %54 : vector<2x16x16xf32>
    %c0_38 = arith.constant 0 : index
    %c0_39 = arith.constant 0 : index
    %c0_40 = arith.constant 0 : index
    %c0_41 = arith.constant 0 : index
    %56 = vector.load %arg4[%c0_38, %c0_39, %c0_40, %c0_41] : memref<2x1x16x16xf32, #tpu.memory_space<vmem>>, vector<2x1x16x16xf32>
    %57 = vector.shape_cast %56 : vector<2x1x16x16xf32> to vector<2x16x16xf32>
    %58 = vector.shape_cast %55 : vector<2x16x16xf32> to vector<2x1x16x16xf32>
    tpu.vector_store %arg4[%c0_38, %c0_39, %c0_40, %c0_41], %58 {strides = array<i32>} : memref<2x1x16x16xf32, #tpu.memory_space<vmem>>, vector<2x1x16x16xf32>,
    return
  }
  func.func @transform_0(%arg0: i32, %arg1: i32) -> (i32, i32, i32, i32) {
    %c0_i32 = arith.constant 0 : i32
    %c0_i32_0 = arith.constant 0 : i32
    %c0_i32_1 = arith.constant 0 : i32
    return %arg0, %c0_i32, %arg1, %c0_i32_0 : i32, i32, i32, i32
  }
  func.func @transform_1(%arg0: i32, %arg1: i32) -> (i32, i32, i32, i32) {
    %c0_i32 = arith.constant 0 : i32
    %c0_i32_0 = arith.constant 0 : i32
    %c0_i32_1 = arith.constant 0 : i32
    return %arg0, %arg1, %c0_i32, %c0_i32_0 : i32, i32, i32, i32
  }
  func.func @transform_2(%arg0: i32, %arg1: i32) -> (i32, i32, i32, i32) {
    %c0_i32 = arith.constant 0 : i32
    %c0_i32_0 = arith.constant 0 : i32
    %c0_i32_1 = arith.constant 0 : i32
    return %arg0, %c0_i32, %arg1, %c0_i32_0 : i32, i32, i32, i32
  }
}

</mosaic_0001>

<llo_original>
// kernel: tpu_custom_call.1
$region0: #{tpu_custom_call.1}
  #allocation0 [shape = 'u32[]', space=smem, size = 0x4, offset = 0x4, fixed_abs, tag = 'smem constant byte address 0x4 - core index']
  #allocation1 [shape = 'u32[144,128]{1,0:T(1,128)}', space=vmem, size = 0x12000, scoped, tag = 'internal scratch']
  #allocation2 [shape = 'f32[2,18,18]{2,1,0:T(8,128)}', space=vmem, size = 0x6000, scoped, tag = 'scratch operand']
  %s0 = inlined_call_operand.hbm [shape: f32[2,3,16,16], index: 0, kind: input, shape index: {}]
  %s1 = inlined_call_operand.vmem [shape: f32[2,1,6,16], index: 1, kind: input, shape index: {}]
  %s2 = inlined_call_operand.hbm [shape: f32[2,1,16,16], index: 2, kind: output, shape index: {}]
  %s3 = sld [smem:[#allocation0]]
  $region22: #{tpu_custom_call.1} parent=0
    _
  %s5 = ssub.s32 1, %s3
  %s6 = scalar_select 0, %s5, %s3
  $region1: #{tpu_custom_call.1} parent=0
    #allocation3 [shape = 'u8[49152]{0}', space=vmem, size = 0xc000, scoped, tag = 'input window, operand 0, single buffered']
    #allocation4 [shape = 's32[1]{0}', space=sflag, size = 0x4, scoped, tag = 'scoped memory for tpu_custom_call.1']
    #allocation5 [shape = 's32[1]{0}', space=sflag, size = 0x4, scoped, tag = 'scoped memory for tpu_custom_call.1']
    #allocation6 [shape = 'u8[16384]{0}', space=vmem, size = 0x4000, scoped, tag = 'output window, operand 0, single buffered']
    %7 = vsyncpa [#allocation4], 0
    %8 = vsyncpa [#allocation5], 0
    // Predicated region
    $region2: #{tpu_custom_call.1} parent=1 // pred_check
      _
    $region3: #{tpu_custom_call.1} parent=1 // pred_check_branch
      %10 = sbr.rel (0) target = $region5
    $region4: #{tpu_custom_call.1} parent=1 // pred_region
      %s12 = ssub.s32 1536, 1536
      %13 = vsyncadd [#allocation4], %s12
      %s14 = sshll.u32 [#allocation3], 4
      %s15 = int_to_ptr.vmem [resolvable:$true] %s14
      %20 = dma.hbm_to_vmem [thread:$0]  %s0, 1536, %s15, [#allocation4], 128, 128, 8
    $region5: #{tpu_custom_call.1} parent=1 // pred_fallthru
      _
    // Predicated region
    $region6: #{tpu_custom_call.1} parent=1 // pred_check
      _
    $region7: #{tpu_custom_call.1} parent=1 // pred_check_branch
      %22 = sbr.rel (0) target = $region9
    $region8: #{tpu_custom_call.1} parent=1 // pred_region
      _
    $region9: #{tpu_custom_call.1} parent=1 // pred_fallthru
      _
    // Predicated region
    $region10: #{tpu_custom_call.1} parent=1 // pred_check
      _
    $region11: #{tpu_custom_call.1} parent=1 // pred_check_branch
      %24 = sbr.rel (0) target = $region13
    $region12: #{tpu_custom_call.1} parent=1 // pred_region
      %25 = dma.done [#allocation4], 1536
    $region13: #{tpu_custom_call.1} parent=1 // pred_fallthru
      _
    %v26 = vld [vmem:[#allocation3] sm:$0xff]
    %v27 = vld [vmem:[#allocation3 + $0x8] sm:$0xff]
    %v28 = vld [vmem:[#allocation3 + $0x10] sm:$0xff]
    %v29 = vld [vmem:[#allocation3 + $0x18] sm:$0xff]
    %v30 = vld [vmem:[#allocation3 + $0x20] sm:$0xff]
    %v31 = vld [vmem:[#allocation3 + $0x28] sm:$0xff]
    %v32 = vld [vmem:[#allocation3 + $0x30] sm:$0xff]
    %v33 = vld [vmem:[#allocation3 + $0x38] sm:$0xff]
    %v34 = vld [vmem:[#allocation3 + $0x40] sm:$0xff]
    %v35 = vld [vmem:[#allocation3 + $0x48] sm:$0xff]
    %v36 = vld [vmem:[#allocation3 + $0x50] sm:$0xff]
    %v37 = vld [vmem:[#allocation3 + $0x58] sm:$0xff]
    %v38 = vld [vmem:[%s1] sm:$0x3f]
    %v39 = vld [vmem:[%s1 + $0x8] sm:$0x3f]
    %v40 = vmul.f32 %v26, 0.25678906
    %v41 = vmul.f32 %v27, 0.25678906
    %v42 = vmul.f32 %v32, 0.25678906
    %v43 = vmul.f32 %v33, 0.25678906
    %v44 = vmul.f32 %v28, 0.50412893
    %v45 = vmul.f32 %v29, 0.50412893
    %v46 = vmul.f32 %v34, 0.50412893
    %v47 = vmul.f32 %v35, 0.50412893
    %v48 = vadd.f32 %v40, %v44
    %v49 = vadd.f32 %v41, %v45
    %v50 = vadd.f32 %v42, %v46
    %v51 = vadd.f32 %v43, %v47
    %v52 = vmul.f32 %v30, 0.09790625
    %v53 = vmul.f32 %v31, 0.09790625
    %v54 = vmul.f32 %v36, 0.09790625
    %v55 = vmul.f32 %v37, 0.09790625
    %v56 = vadd.f32 %v48, %v52
    %v57 = vadd.f32 %v49, %v53
    %v58 = vadd.f32 %v50, %v54
    %v59 = vadd.f32 %v51, %v55
    %v60 = vmul.f32 %v38, 0.25678906
    %v61 = vmul.f32 %v39, 0.25678906
    %v62 = vmul.f32 %v38, 0.50412893
    %v63 = vmul.f32 %v39, 0.50412893
    %v66 = vrot.slane %v62, 1
    %v67 = vrot.slane %v63, 1
    %v70 = vadd.f32 %v60, %v66
    %v71 = vadd.f32 %v61, %v67
    %v72 = vmul.f32 %v38, 0.09790625
    %v73 = vmul.f32 %v39, 0.09790625
    %v76 = vrot.slane %v72, 2
    %v77 = vrot.slane %v73, 2
    %v80 = vadd.f32 %v70, %v76
    %v81 = vadd.f32 %v71, %v77
    %vm82 = vcmask 146432
    %83 = vst.msk [vmem:[#allocation2] sm:$0xff] %vm82, 0.0
    %84 = vst.msk [vmem:[#allocation2 + $0x8] sm:$0xff] %vm82, 0.0
    %vm85 = vcmask 140288
    %86 = vst.msk [vmem:[#allocation2 + $0x10] sm:$0x3] %vm85, 0.0
    %87 = vst.msk [vmem:[#allocation2 + $0x18] sm:$0xff] %vm82, 0.0
    %88 = vst.msk [vmem:[#allocation2 + $0x20] sm:$0xff] %vm82, 0.0
    %89 = vst.msk [vmem:[#allocation2 + $0x28] sm:$0x3] %vm85, 0.0
    %94 = vrot.lane.b32.xlu0 %v56, 1
    %v95 = vpop.permute.xlu0 %94
    %96 = vrot.lane.b32.xlu0 %v57, 1
    %v97 = vpop.permute.xlu0 %96
    %98 = vrot.lane.b32.xlu0 %v58, 1
    %v99 = vpop.permute.xlu0 %98
    %100 = vrot.lane.b32.xlu0 %v59, 1
    %v101 = vpop.permute.xlu0 %100
    %vm106 = vcmask 138248
    %107 = vst.msk [vmem:[#allocation2 + $0x1] sm:$0xff] %vm106, %v95
    %108 = vst.msk [vmem:[#allocation2 + $0x9] sm:$0xff] %vm106, %v97
    %109 = vst.msk [vmem:[#allocation2 + $0x19] sm:$0xff] %vm106, %v99
    %110 = vst.msk [vmem:[#allocation2 + $0x21] sm:$0xff] %vm106, %v101
    %113 = vrot.lane.b32.xlu0 %v80, 1
    %v114 = vpop.permute.xlu0 %113
    %115 = vrot.lane.b32.xlu0 %v81, 1
    %v116 = vpop.permute.xlu0 %115
    %vm119 = vcmask 131080
    %120 = vst.msk [vmem:[#allocation2] sm:$0x1] %vm119, %v114
    %121 = vst.msk [vmem:[#allocation2 + $0x18] sm:$0x1] %vm119, %v116
    %vm122 = vcmask 134155
    %123 = vst.msk [vmem:[#allocation2 + $0xe] sm:$0x8] %vm122, %v114
    %124 = vst.msk [vmem:[#allocation2 + $0x26] sm:$0x8] %vm122, %v116
    %v125 = vld [vmem:[#allocation2 + $0x2] sm:$0xff]
    %v126 = vld [vmem:[#allocation2 + $0xa] sm:$0xff]
    %v127 = vld [vmem:[#allocation2 + $0x1a] sm:$0xff]
    %v128 = vld [vmem:[#allocation2 + $0x22] sm:$0xff]
    %v129 = vld [vmem:[#allocation2] sm:$0xff]
    %v130 = vld [vmem:[#allocation2 + $0x8] sm:$0xff]
    %v131 = vld [vmem:[#allocation2 + $0x18] sm:$0xff]
    %v132 = vld [vmem:[#allocation2 + $0x20] sm:$0xff]
    %v133 = vsub.f32 %v125, %v129
    %v134 = vsub.f32 %v126, %v130
    %v135 = vsub.f32 %v127, %v131
    %v136 = vsub.f32 %v128, %v132
    %v137 = vld [vmem:[#allocation2 + $0x1] sm:$0xff]
    %v138 = vld [vmem:[#allocation2 + $0x9] sm:$0xff]
    %v139 = vld [vmem:[#allocation2 + $0x19] sm:$0xff]
    %v140 = vld [vmem:[#allocation2 + $0x21] sm:$0xff]
    %145 = vrot.lane.b32.xlu0 %v137, 2
    %v146 = vpop.permute.xlu0 %145
    %147 = vrot.lane.b32.xlu0 %v138, 2
    %v148 = vpop.permute.xlu0 %147
    %149 = vrot.lane.b32.xlu0 %v139, 2
    %v150 = vpop.permute.xlu0 %149
    %151 = vrot.lane.b32.xlu0 %v140, 2
    %v152 = vpop.permute.xlu0 %151
    %v157 = vsub.f32 %v137, %v146
    %v158 = vsub.f32 %v138, %v148
    %v159 = vsub.f32 %v139, %v150
    %v160 = vsub.f32 %v140, %v152
    %v161 = vmul.f32 %v133, %v133
    %v162 = vmul.f32 %v134, %v134
    %v163 = vmul.f32 %v135, %v135
    %v164 = vmul.f32 %v136, %v136
    %v165 = vmul.f32 %v157, %v157
    %v166 = vmul.f32 %v158, %v158
    %v167 = vmul.f32 %v159, %v159
    %v168 = vmul.f32 %v160, %v160
    %173 = vrot.lane.b32.xlu0 %v165, 127
    %v174 = vpop.permute.xlu0 %173
    %175 = vrot.lane.b32.xlu0 %v166, 127
    %v176 = vpop.permute.xlu0 %175
    %177 = vrot.lane.b32.xlu0 %v167, 127
    %v178 = vpop.permute.xlu0 %177
    %179 = vrot.lane.b32.xlu0 %v168, 127
    %v180 = vpop.permute.xlu0 %179
    %v185 = vadd.f32 %v161, %v174
    %v186 = vadd.f32 %v162, %v176
    %v187 = vadd.f32 %v163, %v178
    %v188 = vadd.f32 %v164, %v180
    %v189 = vadd.f32 %v185, 1e-06
    %v190 = vadd.f32 %v186, 1e-06
    %v191 = vadd.f32 %v187, 1e-06
    %v192 = vadd.f32 %v188, 1e-06
    %v193 = vrsqrt.pop %v189
    %v194 = vmul.f32 %v189, %v193
    %vm195 = vcmp.eq.f32.partialorder %v189, inf
    %v196 = vsel %vm195, %v189, %v194
    %vm197 = vcmp.eq.f32.partialorder %v189, 0.0
    %v198 = vand.u32 %v189, 2147483648
    %v199 = vsel %vm197, %v198, %v196
    %v200 = vrsqrt.pop %v190
    %v201 = vmul.f32 %v190, %v200
    %vm202 = vcmp.eq.f32.partialorder %v190, inf
    %v203 = vsel %vm202, %v190, %v201
    %vm204 = vcmp.eq.f32.partialorder %v190, 0.0
    %v205 = vand.u32 %v190, 2147483648
    %v206 = vsel %vm204, %v205, %v203
    %v207 = vrsqrt.pop %v191
    %v208 = vmul.f32 %v191, %v207
    %vm209 = vcmp.eq.f32.partialorder %v191, inf
    %v210 = vsel %vm209, %v191, %v208
    %vm211 = vcmp.eq.f32.partialorder %v191, 0.0
    %v212 = vand.u32 %v191, 2147483648
    %v213 = vsel %vm211, %v212, %v210
    %v214 = vrsqrt.pop %v192
    %v215 = vmul.f32 %v192, %v214
    %vm216 = vcmp.eq.f32.partialorder %v192, inf
    %v217 = vsel %vm216, %v192, %v215
    %vm218 = vcmp.eq.f32.partialorder %v192, 0.0
    %v219 = vand.u32 %v192, 2147483648
    %v220 = vsel %vm218, %v219, %v217
    %225 = vrot.lane.b32.xlu0 %v199, 127
    %v226 = vpop.permute.xlu0 %225
    %227 = vrot.lane.b32.xlu0 %v206, 127
    %v228 = vpop.permute.xlu0 %227
    %229 = vrot.lane.b32.xlu0 %v213, 127
    %v230 = vpop.permute.xlu0 %229
    %231 = vrot.lane.b32.xlu0 %v220, 127
    %v232 = vpop.permute.xlu0 %231
    %vm237 = vcmask 130048
    %238 = vst.msk [vmem:[#allocation6] sm:$0xff] %vm237, %v226
    %239 = vst.msk [vmem:[#allocation6 + $0x8] sm:$0xff] %vm237, %v228
    %240 = vst.msk [vmem:[#allocation6 + $0x10] sm:$0xff] %vm237, %v230
    %241 = vst.msk [vmem:[#allocation6 + $0x18] sm:$0xff] %vm237, %v232
    // Predicated region
    $region14: #{tpu_custom_call.1} parent=1 // pred_check
      _
    $region15: #{tpu_custom_call.1} parent=1 // pred_check_branch
      %243 = sbr.rel (0) target = $region17
    $region16: #{tpu_custom_call.1} parent=1 // pred_region
      %s245 = ssub.s32 512, 512
      %246 = vsyncadd [#allocation5], %s245
      %s247 = sshll.u32 [#allocation6], 4
      %s248 = int_to_ptr.vmem [resolvable:$true] %s247
      %253 = dma.vmem_to_hbm [thread:$0]  %s248, 512, %s2, [#allocation5], 128, 128, 8
    $region17: #{tpu_custom_call.1} parent=1 // pred_fallthru
      _
    // Predicated region
    $region18: #{tpu_custom_call.1} parent=1 // pred_check
      _
    $region19: #{tpu_custom_call.1} parent=1 // pred_check_branch
      %255 = sbr.rel (0) target = $region21
    $region20: #{tpu_custom_call.1} parent=1 // pred_region
      %256 = dma.done [#allocation5], 512
    $region21: #{tpu_custom_call.1} parent=1 // pred_fallthru
      _
    %257 = vsyncpa [#allocation4], 1
    %258 = vsyncpa [#allocation5], 1

</llo_original>
